<compile_context>
chip_gen: v5e
topology: v5e:2x2
jax: 0.10.0
libtpu: 0.0.40
codegen_flags: <defaults>
</compile_context>

<pallas_src>
import functools
import math

import jax
import jax.numpy as jnp
from jax.experimental import pallas as pl
from jax.experimental.pallas import tpu as pltpu


# ----------------------------------------------------------------------------
# Small helpers shared by the kernels
# ----------------------------------------------------------------------------
def _mxu_dot(a, b):
    """bf16 MXU feed, f32 accumulation."""
    return jnp.dot(a.astype(jnp.bfloat16), b.astype(jnp.bfloat16),
                   preferred_element_type=jnp.float32)


def _qk_dot(a, b):
    """Contract last dims of a:(S,dh) and b:(S,dh) -> (S,S); bf16 feed, f32 acc."""
    return jax.lax.dot_general(
        a.astype(jnp.bfloat16), b.astype(jnp.bfloat16),
        dimension_numbers=(((1,), (1,)), ((), ())),
        preferred_element_type=jnp.float32)


def _layernorm(x, g, b, eps=1e-5):
    mu = jnp.mean(x, axis=-1, keepdims=True)
    var = jnp.mean((x - mu) ** 2, axis=-1, keepdims=True)
    return (x - mu) * jax.lax.rsqrt(var + eps) * g + b


def _full_spec(a):
    nd = a.ndim
    return pl.BlockSpec(a.shape, lambda i, _nd=nd: (0,) * _nd)


def _pcall(kernel, out_shape, *args, out_dtype=jnp.float32):
    # Everything at these shapes fits VMEM as a single full block
    # (block_shape == array shape bypasses the (8,128) divisibility rule).
    return pl.pallas_call(
        kernel,
        grid=(1,),
        in_specs=[_full_spec(a) for a in args],
        out_specs=pl.BlockSpec(out_shape, lambda i, _nd=len(out_shape): (0,) * _nd),
        out_shape=jax.ShapeDtypeStruct(out_shape, out_dtype),
    )(*args)


# ----------------------------------------------------------------------------
# Kernels
# ----------------------------------------------------------------------------
def _linear_kernel(x_ref, w_ref, b_ref, o_ref):
    o_ref[...] = _mxu_dot(x_ref[...], w_ref[...]) + b_ref[...]


def _layernorm_kernel(x_ref, g_ref, b_ref, o_ref):
    o_ref[...] = _layernorm(x_ref[...], g_ref[...], b_ref[...])


def _ln_proj_kernel(x_ref, g_ref, b_ref, w_ref, o_ref):
    # Final LayerNorm fused with the (bias-free) CLIP projection.
    y = _layernorm(x_ref[...], g_ref[...], b_ref[...])
    o_ref[...] = _mxu_dot(y, w_ref[...])


def _mean_pool_linear_kernel(x_ref, w_ref, b_ref, o_ref):
    # x: (F, E) frame embeddings -> (1, E_out)
    m = jnp.mean(x_ref[...], axis=0, keepdims=True)
    o_ref[...] = _mxu_dot(m, w_ref[...]) + b_ref[...]


def _block_kernel(x_ref, ln1_g_ref, ln1_b_ref, qkv_w_ref, qkv_b_ref,
                  out_w_ref, out_b_ref, ln2_g_ref, ln2_b_ref,
                  fc_w_ref, fc_b_ref, cproj_w_ref, cproj_b_ref, o_ref,
                  *, heads, causal, scale):
    # Fused transformer block for ONE sequence (grid iterates batch/frames).
    # x_ref / o_ref: (S, D); all intermediates stay resident in VMEM.
    x = x_ref[...]
    S, D = x.shape
    dh = D // heads

    # ---- attention sub-block ----
    y = _layernorm(x, ln1_g_ref[...], ln1_b_ref[...])
    qkv = _mxu_dot(y, qkv_w_ref[...]) + qkv_b_ref[...]          # (S, 3D)
    out_w = out_w_ref[...]                                       # (D, D)

    if causal:
        qi = jax.lax.broadcasted_iota(jnp.int32, (S, S), 0)
        ki = jax.lax.broadcasted_iota(jnp.int32, (S, S), 1)
        mask_bias = jnp.where(ki <= qi, 0.0, -1e30).astype(jnp.float32)
    else:
        mask_bias = None

    attn = jnp.zeros((S, D), jnp.float32)
    for h in range(heads):                                       # static unroll
        qh = qkv[:, h * dh:(h + 1) * dh]
        kh = qkv[:, D + h * dh: D + (h + 1) * dh]
        vh = qkv[:, 2 * D + h * dh: 2 * D + (h + 1) * dh]
        s = _qk_dot(qh, kh) * scale                              # (S, S) f32
        if mask_bias is not None:
            s = s + mask_bias
        m = jnp.max(s, axis=-1, keepdims=True)
        e = jnp.exp(s - m)
        p = e * pl.reciprocal(jnp.sum(e, axis=-1, keepdims=True), approx=True)
        oh = _mxu_dot(p, vh)                                     # (S, dh)
        # Fold the concat-over-heads into the output projection:
        attn = attn + _mxu_dot(oh, out_w[h * dh:(h + 1) * dh, :])
    x = x + attn + out_b_ref[...]                                # residual (in VMEM)

    # ---- MLP sub-block (QuickGELU, as in CLIP) ----
    y = _layernorm(x, ln2_g_ref[...], ln2_b_ref[...])
    hdn = _mxu_dot(y, fc_w_ref[...]) + fc_b_ref[...]
    hdn = hdn * jax.nn.sigmoid(1.702 * hdn)
    x = x + _mxu_dot(hdn, cproj_w_ref[...]) + cproj_b_ref[...]   # residual (in VMEM)

    o_ref[...] = x


# ----------------------------------------------------------------------------
# Kernel wrappers
# ----------------------------------------------------------------------------
def pallas_linear(x, w, b):
    return _pcall(_linear_kernel, (x.shape[0], w.shape[1]), x, w, b.reshape(1, -1))


def pallas_layernorm(x, g, b):
    return _pcall(_layernorm_kernel, x.shape, x, g.reshape(1, -1), b.reshape(1, -1))


def pallas_ln_proj(x, g, b, w):
    return _pcall(_ln_proj_kernel, (x.shape[0], w.shape[1]),
                  x, g.reshape(1, -1), b.reshape(1, -1), w)


def pallas_transformer_block(x, p, *, causal, heads):
    # x: (B, S, D); one fused pallas_call, grid over B (parallel -> v7x 2 TCs).
    B, S, D = x.shape
    dh = D // heads
    kern = functools.partial(_block_kernel, heads=heads, causal=causal,
                             scale=1.0 / math.sqrt(dh))
    weights = [
        p["ln1_g"].reshape(1, -1), p["ln1_b"].reshape(1, -1),
        p["qkv_w"], p["qkv_b"].reshape(1, -1),
        p["out_w"], p["out_b"].reshape(1, -1),
        p["ln2_g"].reshape(1, -1), p["ln2_b"].reshape(1, -1),
        p["fc_w"], p["fc_b"].reshape(1, -1),
        p["cproj_w"], p["cproj_b"].reshape(1, -1),
    ]
    x_spec = pl.BlockSpec((None, S, D), lambda i: (i, 0, 0))
    w_specs = [pl.BlockSpec(w.shape, lambda i, _nd=w.ndim: (0,) * _nd)
               for w in weights]
    return pl.pallas_call(
        kern,
        grid=(B,),
        in_specs=[x_spec] + w_specs,
        out_specs=pl.BlockSpec((None, S, D), lambda i: (i, 0, 0)),
        out_shape=jax.ShapeDtypeStruct((B, S, D), jnp.float32),
        compiler_params=pltpu.CompilerParams(
            dimension_semantics=("parallel",)),
    )(x, *weights)


# ----------------------------------------------------------------------------
# Tiny CLIP-like model built from the kernels
# ----------------------------------------------------------------------------
CLIP_MEAN = jnp.array([0.48145466, 0.4578275, 0.40821073], dtype=jnp.float32)
CLIP_STD = jnp.array([0.26862954, 0.26130258, 0.27577711], dtype=jnp.float32)


def encode_image(video_uint8, p):
    # video_uint8: (F, H, W, 3) uint8 -> (F, embed_dim)
    # ToTensor + Normalize are folded into the patch "conv":
    #   x_norm = raw * 1/(255*std) - mean/std          (per-channel affine)
    #   patches_norm @ W = patches_raw @ (W * scale_feat) + (offset_feat @ W)
    F, H, W, C = video_uint8.shape
    ps, width, heads = p["patch"], p["width"], p["heads"]
    n_patch = (H // ps) * (W // ps)

    x = jnp.transpose(video_uint8.astype(jnp.float32), (0, 3, 1, 2))   # (F,C,H,W) raw [0,255]
    patches = (x.reshape(F, C, H // ps, ps, W // ps, ps)
                 .transpose(0, 2, 4, 1, 3, 5)
                 .reshape(F * n_patch, C * ps * ps))                    # channel-major features

    scale_feat = jnp.repeat(1.0 / (255.0 * CLIP_STD), ps * ps)          # (C*ps*ps,)
    offset_feat = jnp.repeat(-CLIP_MEAN / CLIP_STD, ps * ps)            # (C*ps*ps,)
    conv_w_eff = p["conv_w"] * scale_feat[:, None]
    conv_b_eff = offset_feat @ p["conv_w"]                              # (width,)

    x = pallas_linear(patches, conv_w_eff, conv_b_eff)                  # patch projection
    x = x.reshape(F, n_patch, width)
    cls = jnp.broadcast_to(p["class_emb"][None, None, :], (F, 1, width))
    x = jnp.concatenate([cls, x], axis=1) + p["pos_emb"][None, :, :]
    S = n_patch + 1

    x = pallas_layernorm(x.reshape(F * S, width),
                         p["ln_pre_g"], p["ln_pre_b"]).reshape(F, S, width)
    for blk in p["blocks"]:
        x = pallas_transformer_block(x, blk, causal=False, heads=heads)

    cls_tok = x[:, 0, :]                                                # (F, width)
    return pallas_ln_proj(cls_tok, p["ln_post_g"], p["ln_post_b"], p["proj"])


def encode_text(text, p):
    # text: (B, S) int32 token ids -> (B, embed_dim)
    B, S = text.shape
    heads = p["heads"]
    x = jnp.take(p["tok_emb"], text, axis=0) + p["pos_emb"][None, :, :]  # gather embedding
    for blk in p["blocks"]:
        x = pallas_transformer_block(x, blk, causal=True, heads=heads)
    # CLIP pools at the EOT position (argmax of token ids). Row-wise LN commutes
    # with the row gather, so pool first, then fuse ln_final + text projection.
    # TODO(synk): with synthetic random token ids argmax is an arbitrary position.
    eot = jnp.argmax(text, axis=-1)
    pooled = x[jnp.arange(B), eot]                                       # (B, width)
    return pallas_ln_proj(pooled, p["ln_final_g"], p["ln_final_b"], p["text_proj"])


def model_video(frame_embeddings, p):
    # frame_embeddings: (1, F, E) -> (1, E_out)  (synthetic temporal aggregator)
    x = frame_embeddings[0]
    return _pcall(_mean_pool_linear_kernel, (1, p["agg_w"].shape[1]),
                  x, p["agg_w"], p["agg_b"].reshape(1, -1))


def clip_wrapper_forward(video, text, params):
    # Mirrors CLIPWrapper.forward (preprocess is folded into encode_image):
    frame_embeddings = encode_image(video, params["visual"])            # encode_image
    text_embeddings = encode_text(text, params["text"])                 # encode_text
    video_embedding = model_video(frame_embeddings[None, ...], params["agg"])
    return video_embedding, text_embeddings


# ----------------------------------------------------------------------------
# Deterministic parameter init (synthetic, ViT-B/32-like structure at tiny size)
# ----------------------------------------------------------------------------
def _block_params(key, width, heads, mlp_ratio=4):
    ks = jax.random.split(key, 4)
    s = 0.02
    return {
        "ln1_g": jnp.ones((width,), jnp.float32),
        "ln1_b": jnp.zeros((width,), jnp.float32),
        "qkv_w": s * jax.random.normal(ks[0], (width, 3 * width), jnp.float32),
        "qkv_b": jnp.zeros((3 * width,), jnp.float32),
        "out_w": s * jax.random.normal(ks[1], (width, width), jnp.float32),
        "out_b": jnp.zeros((width,), jnp.float32),
        "ln2_g": jnp.ones((width,), jnp.float32),
        "ln2_b": jnp.zeros((width,), jnp.float32),
        "fc_w": s * jax.random.normal(ks[2], (width, mlp_ratio * width), jnp.float32),
        "fc_b": jnp.zeros((mlp_ratio * width,), jnp.float32),
        "cproj_w": s * jax.random.normal(ks[3], (mlp_ratio * width, width), jnp.float32),
        "cproj_b": jnp.zeros((width,), jnp.float32),
    }


def init_params(key, *, img_size=32, patch=8, vis_width=64, vis_heads=4, vis_layers=1,
                vocab=64, ctx=8, txt_width=64, txt_heads=4, txt_layers=1, embed_dim=32):
    keys = jax.random.split(key, 12)
    s = 0.02
    n_patch = (img_size // patch) ** 2
    visual = {
        "patch": patch, "width": vis_width, "heads": vis_heads,
        "conv_w": s * jax.random.normal(keys[0], (3 * patch * patch, vis_width), jnp.float32),
        "class_emb": s * jax.random.normal(keys[1], (vis_width,), jnp.float32),
        "pos_emb": s * jax.random.normal(keys[2], (n_patch + 1, vis_width), jnp.float32),
        "ln_pre_g": jnp.ones((vis_width,), jnp.float32),
        "ln_pre_b": jnp.zeros((vis_width,), jnp.float32),
        "blocks": [_block_params(k, vis_width, vis_heads)
                   for k in jax.random.split(keys[3], vis_layers)],
        "ln_post_g": jnp.ones((vis_width,), jnp.float32),
        "ln_post_b": jnp.zeros((vis_width,), jnp.float32),
        "proj": s * jax.random.normal(keys[4], (vis_width, embed_dim), jnp.float32),
    }
    textp = {
        "heads": txt_heads,
        "tok_emb": s * jax.random.normal(keys[5], (vocab, txt_width), jnp.float32),
        "pos_emb": s * jax.random.normal(keys[6], (ctx, txt_width), jnp.float32),
        "blocks": [_block_params(k, txt_width, txt_heads)
                   for k in jax.random.split(keys[7], txt_layers)],
        "ln_final_g": jnp.ones((txt_width,), jnp.float32),
        "ln_final_b": jnp.zeros((txt_width,), jnp.float32),
        "text_proj": s * jax.random.normal(keys[8], (txt_width, embed_dim), jnp.float32),
    }
    agg = {
        "agg_w": s * jax.random.normal(keys[9], (embed_dim, embed_dim), jnp.float32),
        "agg_b": jnp.zeros((embed_dim,), jnp.float32),
    }
    return {"visual": visual, "text": textp, "agg": agg}


# TODO(synk): real CLIP ViT-B/32 weights / tokenizer are not loadable here; this
# script uses a structurally-equivalent tiny CLIP with deterministic synthetic weights.
# TODO(synk): at production ViT-B scale, replace the grid=(1,) full-block wrappers with
# row-tiled grids (128-512 rows, 128/256-aligned) and budget bf16 weights vs v7x 64 MiB VMEM.

if __name__ == "__main__":
    key = jax.random.PRNGKey(0)
    k_vid, k_txt, k_par = jax.random.split(key, 3)

    # Small shapes: 2 video frames of 32x32 RGB, 2 text sequences of length 8.
    F, H, W = 2, 32, 32
    video = jax.random.randint(k_vid, (F, H, W, 3), 0, 256, dtype=jnp.int32).astype(jnp.uint8)
    text = jax.random.randint(k_txt, (2, 8), 0, 64, dtype=jnp.int32)

    params = init_params(k_par, img_size=H, patch=8)

    video_embedding, text_embeddings = clip_wrapper_forward(video, text, params)
    jax.block_until_ready((video_embedding, text_embeddings))

    assert video_embedding.shape == (1, 32)
    assert text_embeddings.shape == (2, 32)
    assert bool(jnp.all(jnp.isfinite(video_embedding)))
    assert bool(jnp.all(jnp.isfinite(text_embeddings)))
    print("KERNEL_OK")
</pallas_src>

<mosaic_0001>
module attributes {stable_mosaic.version = 11 : i64} {
  func.func @_linear_kernel(%arg0: i32, %arg1: memref<32x192xf32, #tpu.memory_space<vmem>>, %arg2: memref<192x64xf32, #tpu.memory_space<vmem>>, %arg3: memref<1x64xf32, #tpu.memory_space<vmem>>, %arg4: memref<32x64xf32, #tpu.memory_space<vmem>>) attributes {dimension_semantics = [#tpu.dimension_semantics<arbitrary>], iteration_bounds = array<i64: 1>, scalar_prefetch = 0 : i64, scratch_operands = 0 : i64, tpu.core_type = #tpu.core_type<tc>, window_params = [{pipeline_mode = #tpu.pipeline_mode<synchronous>, transform_indices = @transform_0, window_bounds = array<i64: 32, 192>}, {pipeline_mode = #tpu.pipeline_mode<synchronous>, transform_indices = @transform_1, window_bounds = array<i64: 192, 64>}, {pipeline_mode = #tpu.pipeline_mode<synchronous>, transform_indices = @transform_2, window_bounds = array<i64: 1, 64>}, {pipeline_mode = #tpu.pipeline_mode<synchronous>, transform_indices = @transform_3, window_bounds = array<i64: 32, 64>}]} {
    %c0 = arith.constant 0 : index
    %c0_0 = arith.constant 0 : index
    %0 = vector.load %arg1[%c0, %c0_0] : memref<32x192xf32, #tpu.memory_space<vmem>>, vector<32x192xf32>
    %c0_1 = arith.constant 0 : index
    %c0_2 = arith.constant 0 : index
    %1 = vector.load %arg2[%c0_1, %c0_2] : memref<192x64xf32, #tpu.memory_space<vmem>>, vector<192x64xf32>
    %2 = arith.truncf %0 : vector<32x192xf32> to vector<32x192xbf16>
    %3 = arith.truncf %1 : vector<192x64xf32> to vector<192x64xbf16>
    %cst = arith.constant dense<0.000000e+00> : vector<32x64xf32>
    %4 = tpu.matmul %2, %3, %cst {dimension_numbers = #tpu.dot_dimension_numbers<[1], [0], [0], [1], [0, 0, 1, 1], [], []>} : vector<32x192xbf16>, vector<192x64xbf16>, vector<32x64xf32> -> vector<32x64xf32>
    %c0_3 = arith.constant 0 : index
    %c0_4 = arith.constant 0 : index
    %5 = vector.load %arg3[%c0_3, %c0_4] : memref<1x64xf32, #tpu.memory_space<vmem>>, vector<1x64xf32>
    %6 = vector.broadcast %5 : vector<1x64xf32> to vector<32x64xf32>
    %7 = arith.addf %4, %6 : vector<32x64xf32>
    %c0_5 = arith.constant 0 : index
    %c0_6 = arith.constant 0 : index
    %8 = vector.load %arg4[%c0_5, %c0_6] : memref<32x64xf32, #tpu.memory_space<vmem>>, vector<32x64xf32>
    tpu.vector_store %arg4[%c0_5, %c0_6], %7 {strides = array<i32>} : memref<32x64xf32, #tpu.memory_space<vmem>>, vector<32x64xf32>,
    return
  }
  func.func @transform_0(%arg0: i32) -> (i32, i32) {
    %c0_i32 = arith.constant 0 : i32
    %c0_i32_0 = arith.constant 0 : i32
    %c0_i32_1 = arith.constant 0 : i32
    return %c0_i32, %c0_i32_0 : i32, i32
  }
  func.func @transform_1(%arg0: i32) -> (i32, i32) {
    %c0_i32 = arith.constant 0 : i32
    %c0_i32_0 = arith.constant 0 : i32
    %c0_i32_1 = arith.constant 0 : i32
    return %c0_i32, %c0_i32_0 : i32, i32
  }
  func.func @transform_2(%arg0: i32) -> (i32, i32) {
    %c0_i32 = arith.constant 0 : i32
    %c0_i32_0 = arith.constant 0 : i32
    %c0_i32_1 = arith.constant 0 : i32
    return %c0_i32, %c0_i32_0 : i32, i32
  }
  func.func @transform_3(%arg0: i32) -> (i32, i32) {
    %c0_i32 = arith.constant 0 : i32
    %c0_i32_0 = arith.constant 0 : i32
    %c0_i32_1 = arith.constant 0 : i32
    return %c0_i32, %c0_i32_0 : i32, i32
  }
}

</mosaic_0001>

<llo_original>
// kernel: tpu_custom_call.1
$region0: #{tpu_custom_call.1}
  #allocation0 [shape = 'u32[]', space=smem, size = 0x4, offset = 0x4, fixed_abs, tag = 'smem constant byte address 0x4 - core index']
  #allocation1 [shape = 'u32[72,128]{1,0:T(1,128)}', space=vmem, size = 0x9000, scoped, tag = 'internal scratch']
  %s0 = inlined_call_operand.vmem [shape: f32[32,192], index: 0, kind: input, shape index: {}]
  %s1 = inlined_call_operand.vmem [shape: f32[192,64], index: 1, kind: input, shape index: {}]
  %s2 = inlined_call_operand.vmem [shape: f32[1,64], index: 2, kind: input, shape index: {}]
  %s3 = inlined_call_operand.hbm [shape: f32[32,64], index: 3, kind: output, shape index: {}]
  %s4 = sld [smem:[#allocation0]]
  $region22: #{tpu_custom_call.1} parent=0
    _
  %s6 = ssub.s32 1, %s4
  %s7 = scalar_select 0, %s6, %s4
  $region1: #{tpu_custom_call.1} parent=0
    #allocation2 [shape = 'u8[16384]{0}', space=vmem, size = 0x4000, scoped, tag = 'output window, operand 0, single buffered']
    #allocation3 [shape = 's32[1]{0}', space=sflag, size = 0x4, scoped, tag = 'scoped memory for tpu_custom_call.1']
    %8 = vsyncpa [#allocation3], 0
    // Predicated region
    $region2: #{tpu_custom_call.1} parent=1 // pred_check
      _
    $region3: #{tpu_custom_call.1} parent=1 // pred_check_branch
      %10 = sbr.rel (0) target = $region5
    $region4: #{tpu_custom_call.1} parent=1 // pred_region
      _
    $region5: #{tpu_custom_call.1} parent=1 // pred_fallthru
      _
    // Predicated region
    $region6: #{tpu_custom_call.1} parent=1 // pred_check
      _
    $region7: #{tpu_custom_call.1} parent=1 // pred_check_branch
      %12 = sbr.rel (0) target = $region9
    $region8: #{tpu_custom_call.1} parent=1 // pred_region
      _
    $region9: #{tpu_custom_call.1} parent=1 // pred_fallthru
      _
    // Predicated region
    $region10: #{tpu_custom_call.1} parent=1 // pred_check
      _
    $region11: #{tpu_custom_call.1} parent=1 // pred_check_branch
      %14 = sbr.rel (0) target = $region13
    $region12: #{tpu_custom_call.1} parent=1 // pred_region
      _
    $region13: #{tpu_custom_call.1} parent=1 // pred_fallthru
      _
    %v16 = vld [vmem:[%s0] sm:$0xff]
    %v17 = vld [vmem:[%s0 + $0x8] sm:$0xff]
    %v18 = vld [vmem:[%s0 + $0x10] sm:$0xff]
    %v19 = vld [vmem:[%s0 + $0x18] sm:$0xff]
    %v20 = vld [vmem:[%s0 + $0x20] sm:$0xff]
    %v21 = vld [vmem:[%s0 + $0x28] sm:$0xff]
    %v22 = vld [vmem:[%s0 + $0x30] sm:$0xff]
    %v23 = vld [vmem:[%s0 + $0x38] sm:$0xff]
    %v24 = vld [vmem:[%s1] sm:$0xff]
    %v25 = vld [vmem:[%s1 + $0x8] sm:$0xff]
    %v26 = vld [vmem:[%s1 + $0x10] sm:$0xff]
    %v27 = vld [vmem:[%s1 + $0x18] sm:$0xff]
    %v28 = vld [vmem:[%s1 + $0x20] sm:$0xff]
    %v29 = vld [vmem:[%s1 + $0x28] sm:$0xff]
    %v30 = vld [vmem:[%s1 + $0x30] sm:$0xff]
    %v31 = vld [vmem:[%s1 + $0x38] sm:$0xff]
    %v32 = vld [vmem:[%s1 + $0x40] sm:$0xff]
    %v33 = vld [vmem:[%s1 + $0x48] sm:$0xff]
    %v34 = vld [vmem:[%s1 + $0x50] sm:$0xff]
    %v35 = vld [vmem:[%s1 + $0x58] sm:$0xff]
    %v36 = vld [vmem:[%s1 + $0x60] sm:$0xff]
    %v37 = vld [vmem:[%s1 + $0x68] sm:$0xff]
    %v38 = vld [vmem:[%s1 + $0x70] sm:$0xff]
    %v39 = vld [vmem:[%s1 + $0x78] sm:$0xff]
    %v40 = vld [vmem:[%s1 + $0x80] sm:$0xff]
    %v41 = vld [vmem:[%s1 + $0x88] sm:$0xff]
    %v42 = vld [vmem:[%s1 + $0x90] sm:$0xff]
    %v43 = vld [vmem:[%s1 + $0x98] sm:$0xff]
    %v44 = vld [vmem:[%s1 + $0xa0] sm:$0xff]
    %v45 = vld [vmem:[%s1 + $0xa8] sm:$0xff]
    %v46 = vld [vmem:[%s1 + $0xb0] sm:$0xff]
    %v47 = vld [vmem:[%s1 + $0xb8] sm:$0xff]
    %v48 = vpack.c.bf16 %v18, %v16
    %v49 = vpack.c.bf16 %v19, %v17
    %v50 = vpack.c.bf16 %v22, %v20
    %v51 = vpack.c.bf16 %v23, %v21
    %v52 = vpack.c.bf16 %v25, %v24
    %v53 = vpack.c.bf16 %v27, %v26
    %v54 = vpack.c.bf16 %v29, %v28
    %v55 = vpack.c.bf16 %v31, %v30
    %v56 = vpack.c.bf16 %v33, %v32
    %v57 = vpack.c.bf16 %v35, %v34
    %v58 = vpack.c.bf16 %v37, %v36
    %v59 = vpack.c.bf16 %v39, %v38
    %v60 = vpack.c.bf16 %v41, %v40
    %v61 = vpack.c.bf16 %v43, %v42
    %v62 = vpack.c.bf16 %v45, %v44
    %v63 = vpack.c.bf16 %v47, %v46
    %v64 = vld [vmem:[%s2] sm:$0x1]
    %v66 = vperm.slane %v64, 0
    %vm68 = vcmask 523264
    %v70 = vsel %vm68, %v49, 0
    %v73 = vsel %vm68, %v51, 0
    %75 = vmatpush.bf16.msra.mxu0 %v59
    %76 = vmatpush.bf16.msra.mxu0 %v58
    %77 = vmatpush.bf16.msra.mxu0 %v57
    %78 = vmatpush.bf16.msra.mxu0 %v56
    %79 = vmatpush.bf16.msra.mxu0 %v55
    %80 = vmatpush.bf16.msra.mxu0 %v54
    %81 = vmatpush.bf16.msra.mxu0 %v53
    %82 = vmatpush.bf16.msra.mxu0 %v52
    %83 = vmatmul.bf16.gmra.mxu0 %v48
    %v84 = vpop.f32.mrf.mxu0
    %v85 = vadd.f32 %v66, %v84
    %v86 = vpop.f32.mrf.mxu0
    %v87 = vadd.f32 %v66, %v86
    %88 = vmatmul.bf16.gmra.mxu0 %v50
    %v89 = vpop.f32.mrf.mxu0
    %v90 = vadd.f32 %v66, %v89
    %v91 = vpop.f32.mrf.mxu0
    %v92 = vadd.f32 %v66, %v91
    %93 = vdwg.mxu0
    %94 = vmatpush.bf16.msra.mxu0 0
    %95 = vmatpush.bf16.msra.mxu0 0
    %96 = vmatpush.bf16.msra.mxu0 0
    %97 = vmatpush.bf16.msra.mxu0 0
    %98 = vmatpush.bf16.msra.mxu0 %v63
    %99 = vmatpush.bf16.msra.mxu0 %v62
    %100 = vmatpush.bf16.msra.mxu0 %v61
    %101 = vmatpush.bf16.msra.mxu0 %v60
    %102 = vmatmul.bf16.gmra.mxu0 %v70
    %v103 = vpop.f32.mrf.mxu0
    %v104 = vadd.f32 %v85, %v103
    %v105 = vpop.f32.mrf.mxu0
    %v106 = vadd.f32 %v87, %v105
    %107 = vmatmul.bf16.gmra.mxu0 %v73
    %v108 = vpop.f32.mrf.mxu0
    %v109 = vadd.f32 %v90, %v108
    %v110 = vpop.f32.mrf.mxu0
    %v111 = vadd.f32 %v92, %v110
    %112 = vdwg.mxu0
    %113 = vst.msk [vmem:[#allocation2] sm:$0xff] %vm68, %v104
    %114 = vst.msk [vmem:[#allocation2 + $0x8] sm:$0xff] %vm68, %v106
    %115 = vst.msk [vmem:[#allocation2 + $0x10] sm:$0xff] %vm68, %v109
    %116 = vst.msk [vmem:[#allocation2 + $0x18] sm:$0xff] %vm68, %v111
    // Predicated region
    $region14: #{tpu_custom_call.1} parent=1 // pred_check
      _
    $region15: #{tpu_custom_call.1} parent=1 // pred_check_branch
      %118 = sbr.rel (0) target = $region17
    $region16: #{tpu_custom_call.1} parent=1 // pred_region
      %120 = vsyncadd [#allocation3], 0
      %s121 = sshll.u32 [#allocation2], 4
      %s122 = int_to_ptr.vmem [resolvable:$true] %s121
      %s123 = sshll.u32 %s3, 4
      %s124 = int_to_ptr.hbm [resolvable:$true] %s123
      %129 = dma.vmem_to_hbm [thread:$0]  %s122, 512, %s124, [#allocation3], 128, 128, 8
    $region17: #{tpu_custom_call.1} parent=1 // pred_fallthru
      _
    // Predicated region
    $region18: #{tpu_custom_call.1} parent=1 // pred_check
      _
    $region19: #{tpu_custom_call.1} parent=1 // pred_check_branch
      %131 = sbr.rel (0) target = $region21
    $region20: #{tpu_custom_call.1} parent=1 // pred_region
      %133 = dma.done [#allocation3], 512
    $region21: #{tpu_custom_call.1} parent=1 // pred_fallthru
      _
    %134 = vsyncpa [#allocation3], 1

</llo_original>
